<compile_context>
chip_gen: v7x
topology: tpu7x:2x2x1
jax: 0.10.0
libtpu: 0.0.40
codegen_flags: <defaults>
</compile_context>

<pallas_src>
import jax
import jax.numpy as jnp
from jax.experimental import pallas as pl
from jax.experimental.pallas import tpu as pltpu

D_IN, D_H1, D_H2, D_OUT = 200, 100, 100, 22
H1_PAD, H2_PAD, OUT_PAD = 128, 128, 128
NEG_BIG = -1e30  # bias for padded output columns -> softmax weight 0


def mlp_kernel(x_ref, w1_ref, b1_ref, w2_ref, b2_ref, w3_ref, b3_ref, o_ref):
    x = x_ref[...]                                                 # (TM, 200) bf16

    # Layer 1: bf16 MXU matmul, f32 accumulate; sigmoid in f32 (EUP).
    h1 = jnp.dot(x, w1_ref[...], preferred_element_type=jnp.float32) + b1_ref[...]
    h1 = jax.nn.sigmoid(h1)

    # Layer 2. (Padded h1 columns hit zero rows of w2 -> no effect.)
    h2 = jnp.dot(h1.astype(jnp.bfloat16), w2_ref[...],
                 preferred_element_type=jnp.float32) + b2_ref[...]
    h2 = jax.nn.sigmoid(h2)

    # Layer 3. Padded output columns have zero weights and bias -1e30.
    logits = jnp.dot(h2.astype(jnp.bfloat16), w3_ref[...],
                     preferred_element_type=jnp.float32) + b3_ref[...]

    # Numerically stable softmax over the (128-padded) last dim.
    m = jnp.max(logits, axis=-1, keepdims=True)
    e = jnp.exp(logits - m)
    denom = jnp.sum(e, axis=-1, keepdims=True)
    o_ref[...] = (e * pl.reciprocal(denom, approx=True)).astype(o_ref.dtype)


def _round_up(n, m):
    return ((n + m - 1) // m) * m


def mlp_forward(x, prepared_params, *, tile_m=256):
    """x: (batch, 200) f32/bf16.  prepared_params: output of prepare_params."""
    w1, b1, w2, b2, w3, b3 = prepared_params
    batch = x.shape[0]
    tm = min(tile_m, _round_up(batch, 8))
    padded_batch = _round_up(batch, tm)

    xb = x.astype(jnp.bfloat16)                     # halve activation HBM traffic
    if padded_batch != batch:
        xb = jnp.pad(xb, ((0, padded_batch - batch), (0, 0)))

    const = lambda a: pl.BlockSpec(a.shape, lambda i: (0,) * a.ndim)

    flops = 2 * padded_batch * (D_IN * H1_PAD + H1_PAD * H2_PAD + H2_PAD * OUT_PAD)
    transcendentals = padded_batch * (H1_PAD + H2_PAD + OUT_PAD + 1)
    bytes_accessed = (padded_batch * D_IN * 2 + padded_batch * OUT_PAD * 4
                      + (w1.size + w2.size + w3.size) * 2
                      + (b1.size + b2.size + b3.size) * 4)

    out = pl.pallas_call(
        mlp_kernel,
        out_shape=jax.ShapeDtypeStruct((padded_batch, OUT_PAD), jnp.float32),
        grid=(padded_batch // tm,),
        in_specs=[
            pl.BlockSpec((tm, D_IN), lambda i: (i, 0)),   # x: pipelined batch tiles
            const(w1), const(b1), const(w2), const(b2), const(w3), const(b3),
        ],
        out_specs=pl.BlockSpec((tm, OUT_PAD), lambda i: (i, 0)),  # lane-dense store
        compiler_params=pltpu.CompilerParams(
            dimension_semantics=("parallel",)),
        cost_estimate=pl.CostEstimate(
            flops=int(flops),
            transcendentals=int(transcendentals),
            bytes_accessed=int(bytes_accessed)),
    )(xb, w1, b1, w2, b2, w3, b3)

    return out[:batch, :D_OUT]


def init_params(key):
    """Deterministic PyTorch-style (uniform +-1/sqrt(fan_in)) init at original shapes."""
    def linear(k, fan_in, fan_out):
        kw, kb = jax.random.split(k)
        bound = 1.0 / jnp.sqrt(fan_in)
        w = jax.random.uniform(kw, (fan_in, fan_out), jnp.float32, -bound, bound)
        b = jax.random.uniform(kb, (fan_out,), jnp.float32, -bound, bound)
        return w, b

    k1, k2, k3 = jax.random.split(key, 3)
    w1, b1 = linear(k1, D_IN, D_H1)
    w2, b2 = linear(k2, D_H1, D_H2)
    w3, b3 = linear(k3, D_H2, D_OUT)
    return w1, b1, w2, b2, w3, b3


def prepare_params(params):
    """Pad hidden/output dims to 128 lanes, cast weights to bf16, biases stay f32."""
    w1, b1, w2, b2, w3, b3 = params

    def pad_w(w, rows, cols):
        return (jnp.zeros((rows, cols), jnp.float32)
                .at[: w.shape[0], : w.shape[1]].set(w)
                .astype(jnp.bfloat16))

    w1p = pad_w(w1, D_IN, H1_PAD)
    w2p = pad_w(w2, H1_PAD, H2_PAD)
    w3p = pad_w(w3, H2_PAD, OUT_PAD)
    b1p = jnp.zeros((1, H1_PAD), jnp.float32).at[0, :D_H1].set(b1)
    b2p = jnp.zeros((1, H2_PAD), jnp.float32).at[0, :D_H2].set(b2)
    b3p = jnp.full((1, OUT_PAD), NEG_BIG, jnp.float32).at[0, :D_OUT].set(b3)
    return w1p, b1p, w2p, b2p, w3p, b3p


def reference(x, params):
    w1, b1, w2, b2, w3, b3 = params
    h1 = jax.nn.sigmoid(x @ w1 + b1)
    h2 = jax.nn.sigmoid(h1 @ w2 + b2)
    return jax.nn.softmax(h2 @ w3 + b3, axis=-1)


if __name__ == "__main__":
    key = jax.random.PRNGKey(0)
    kp, kx = jax.random.split(key)
    params = init_params(kp)
    prepared = prepare_params(params)

    # Small single-tile case and a multi-tile (grid=2, padded-batch) case.
    for batch in (8, 260):
        x = jax.random.normal(jax.random.fold_in(kx, batch), (batch, D_IN), jnp.float32)
        out = mlp_forward(x, prepared)
        jax.block_until_ready(out)

        assert out.shape == (batch, D_OUT)
        # bf16 matmuls + approx reciprocal -> relaxed tolerances.
        assert bool(jnp.allclose(jnp.sum(out, axis=-1), 1.0, atol=5e-3))
        ref = reference(x, params)
        assert bool(jnp.max(jnp.abs(out - ref)) < 5e-2)

    print("KERNEL_OK")
</pallas_src>

<mosaic_0001>
module attributes {stable_mosaic.version = 11 : i64} {
  func.func @mlp_kernel(%arg0: i32, %arg1: memref<8x200xbf16, #tpu.memory_space<vmem>>, %arg2: memref<200x128xbf16, #tpu.memory_space<vmem>>, %arg3: memref<1x128xf32, #tpu.memory_space<vmem>>, %arg4: memref<128x128xbf16, #tpu.memory_space<vmem>>, %arg5: memref<1x128xf32, #tpu.memory_space<vmem>>, %arg6: memref<128x128xbf16, #tpu.memory_space<vmem>>, %arg7: memref<1x128xf32, #tpu.memory_space<vmem>>, %arg8: memref<8x128xf32, #tpu.memory_space<vmem>>) attributes {dimension_semantics = [#tpu.dimension_semantics<parallel>], iteration_bounds = array<i64: 1>, scalar_prefetch = 0 : i64, scratch_operands = 0 : i64, tpu.core_type = #tpu.core_type<tc>, window_params = [{transform_indices = @transform_0, window_bounds = array<i64: 8, 200>}, {pipeline_mode = #tpu.pipeline_mode<synchronous>, transform_indices = @transform_1, window_bounds = array<i64: 200, 128>}, {pipeline_mode = #tpu.pipeline_mode<synchronous>, transform_indices = @transform_2, window_bounds = array<i64: 1, 128>}, {pipeline_mode = #tpu.pipeline_mode<synchronous>, transform_indices = @transform_3, window_bounds = array<i64: 128, 128>}, {pipeline_mode = #tpu.pipeline_mode<synchronous>, transform_indices = @transform_4, window_bounds = array<i64: 1, 128>}, {pipeline_mode = #tpu.pipeline_mode<synchronous>, transform_indices = @transform_5, window_bounds = array<i64: 128, 128>}, {pipeline_mode = #tpu.pipeline_mode<synchronous>, transform_indices = @transform_6, window_bounds = array<i64: 1, 128>}, {transform_indices = @transform_7, window_bounds = array<i64: 8, 128>}]} {
    %c0 = arith.constant 0 : index
    %c0_0 = arith.constant 0 : index
    %0 = vector.load %arg1[%c0, %c0_0] : memref<8x200xbf16, #tpu.memory_space<vmem>>, vector<8x200xbf16>
    %c0_1 = arith.constant 0 : index
    %c0_2 = arith.constant 0 : index
    %1 = vector.load %arg2[%c0_1, %c0_2] : memref<200x128xbf16, #tpu.memory_space<vmem>>, vector<200x128xbf16>
    %cst = arith.constant dense<0.000000e+00> : vector<8x128xf32>
    %2 = tpu.matmul %0, %1, %cst {dimension_numbers = #tpu.dot_dimension_numbers<[1], [0], [0], [1], [0, 0, 1, 1], [], []>} : vector<8x200xbf16>, vector<200x128xbf16>, vector<8x128xf32> -> vector<8x128xf32>
    %c0_3 = arith.constant 0 : index
    %c0_4 = arith.constant 0 : index
    %3 = vector.load %arg3[%c0_3, %c0_4] : memref<1x128xf32, #tpu.memory_space<vmem>>, vector<1x128xf32>
    %4 = vector.broadcast %3 : vector<1x128xf32> to vector<8x128xf32>
    %5 = arith.addf %2, %4 : vector<8x128xf32>
    %6 = arith.negf %5 : vector<8x128xf32>
    %7 = math.exp %6 : vector<8x128xf32>
    %cst_5 = arith.constant 1.000000e+00 : f32
    %8 = vector.broadcast %cst_5 : f32 to vector<8x128xf32>
    %9 = arith.addf %8, %7 : vector<8x128xf32>
    %10 = arith.divf %8, %9 : vector<8x128xf32>
    %11 = arith.truncf %10 : vector<8x128xf32> to vector<8x128xbf16>
    %c0_6 = arith.constant 0 : index
    %c0_7 = arith.constant 0 : index
    %12 = vector.load %arg4[%c0_6, %c0_7] : memref<128x128xbf16, #tpu.memory_space<vmem>>, vector<128x128xbf16>
    %cst_8 = arith.constant dense<0.000000e+00> : vector<8x128xf32>
    %13 = tpu.matmul %11, %12, %cst_8 {dimension_numbers = #tpu.dot_dimension_numbers<[1], [0], [0], [1], [0, 0, 1, 1], [], []>} : vector<8x128xbf16>, vector<128x128xbf16>, vector<8x128xf32> -> vector<8x128xf32>
    %c0_9 = arith.constant 0 : index
    %c0_10 = arith.constant 0 : index
    %14 = vector.load %arg5[%c0_9, %c0_10] : memref<1x128xf32, #tpu.memory_space<vmem>>, vector<1x128xf32>
    %15 = vector.broadcast %14 : vector<1x128xf32> to vector<8x128xf32>
    %16 = arith.addf %13, %15 : vector<8x128xf32>
    %17 = arith.negf %16 : vector<8x128xf32>
    %18 = math.exp %17 : vector<8x128xf32>
    %cst_11 = arith.constant 1.000000e+00 : f32
    %19 = vector.broadcast %cst_11 : f32 to vector<8x128xf32>
    %20 = arith.addf %19, %18 : vector<8x128xf32>
    %21 = arith.divf %19, %20 : vector<8x128xf32>
    %22 = arith.truncf %21 : vector<8x128xf32> to vector<8x128xbf16>
    %c0_12 = arith.constant 0 : index
    %c0_13 = arith.constant 0 : index
    %23 = vector.load %arg6[%c0_12, %c0_13] : memref<128x128xbf16, #tpu.memory_space<vmem>>, vector<128x128xbf16>
    %cst_14 = arith.constant dense<0.000000e+00> : vector<8x128xf32>
    %24 = tpu.matmul %22, %23, %cst_14 {dimension_numbers = #tpu.dot_dimension_numbers<[1], [0], [0], [1], [0, 0, 1, 1], [], []>} : vector<8x128xbf16>, vector<128x128xbf16>, vector<8x128xf32> -> vector<8x128xf32>
    %c0_15 = arith.constant 0 : index
    %c0_16 = arith.constant 0 : index
    %25 = vector.load %arg7[%c0_15, %c0_16] : memref<1x128xf32, #tpu.memory_space<vmem>>, vector<1x128xf32>
    %26 = vector.broadcast %25 : vector<1x128xf32> to vector<8x128xf32>
    %27 = arith.addf %24, %26 : vector<8x128xf32>
    %cst_17 = arith.constant dense<0xFF800000> : vector<8xf32>
    %28 = vector.multi_reduction <maximumf>, %27, %cst_17 [1] : vector<8x128xf32> to vector<8xf32>
    %29 = vector.shape_cast %28 : vector<8xf32> to vector<8x1xf32>
    %30 = vector.broadcast %29 : vector<8x1xf32> to vector<8x128xf32>
    %31 = arith.subf %27, %30 : vector<8x128xf32>
    %32 = math.exp %31 : vector<8x128xf32>
    %cst_18 = arith.constant dense<0.000000e+00> : vector<8xf32>
    %33 = vector.multi_reduction <add>, %32, %cst_18 [1] : vector<8x128xf32> to vector<8xf32>
    %34 = vector.shape_cast %33 : vector<8xf32> to vector<8x1xf32>
    %35 = tpu.reciprocal %34 {approx = true} : vector<8x1xf32> -> vector<8x1xf32>
    %36 = vector.broadcast %35 : vector<8x1xf32> to vector<8x128xf32>
    %37 = arith.mulf %32, %36 : vector<8x128xf32>
    %c0_19 = arith.constant 0 : index
    %c0_20 = arith.constant 0 : index
    %38 = vector.load %arg8[%c0_19, %c0_20] : memref<8x128xf32, #tpu.memory_space<vmem>>, vector<8x128xf32>
    tpu.vector_store %arg8[%c0_19, %c0_20], %37 {strides = array<i32>} : memref<8x128xf32, #tpu.memory_space<vmem>>, vector<8x128xf32>,
    return
  }
  func.func @transform_0(%arg0: i32) -> (i32, i32) {
    %c0_i32 = arith.constant 0 : i32
    %c0_i32_0 = arith.constant 0 : i32
    return %arg0, %c0_i32 : i32, i32
  }
  func.func @transform_1(%arg0: i32) -> (i32, i32) {
    %c0_i32 = arith.constant 0 : i32
    %c0_i32_0 = arith.constant 0 : i32
    %c0_i32_1 = arith.constant 0 : i32
    return %c0_i32, %c0_i32_0 : i32, i32
  }
  func.func @transform_2(%arg0: i32) -> (i32, i32) {
    %c0_i32 = arith.constant 0 : i32
    %c0_i32_0 = arith.constant 0 : i32
    %c0_i32_1 = arith.constant 0 : i32
    return %c0_i32, %c0_i32_0 : i32, i32
  }
  func.func @transform_3(%arg0: i32) -> (i32, i32) {
    %c0_i32 = arith.constant 0 : i32
    %c0_i32_0 = arith.constant 0 : i32
    %c0_i32_1 = arith.constant 0 : i32
    return %c0_i32, %c0_i32_0 : i32, i32
  }
  func.func @transform_4(%arg0: i32) -> (i32, i32) {
    %c0_i32 = arith.constant 0 : i32
    %c0_i32_0 = arith.constant 0 : i32
    %c0_i32_1 = arith.constant 0 : i32
    return %c0_i32, %c0_i32_0 : i32, i32
  }
  func.func @transform_5(%arg0: i32) -> (i32, i32) {
    %c0_i32 = arith.constant 0 : i32
    %c0_i32_0 = arith.constant 0 : i32
    %c0_i32_1 = arith.constant 0 : i32
    return %c0_i32, %c0_i32_0 : i32, i32
  }
  func.func @transform_6(%arg0: i32) -> (i32, i32) {
    %c0_i32 = arith.constant 0 : i32
    %c0_i32_0 = arith.constant 0 : i32
    %c0_i32_1 = arith.constant 0 : i32
    return %c0_i32, %c0_i32_0 : i32, i32
  }
  func.func @transform_7(%arg0: i32) -> (i32, i32) {
    %c0_i32 = arith.constant 0 : i32
    %c0_i32_0 = arith.constant 0 : i32
    return %arg0, %c0_i32 : i32, i32
  }
}

</mosaic_0001>

<llo_original>
// kernel: tpu_custom_call.1
$region0: #{tpu_custom_call.1}
  #allocation0 [shape = 'u32[]', space=smem, size = 0x4, offset = 0x4, fixed_abs, tag = 'smem constant byte address 0x4 - core index']
  #allocation1 [shape = 'u32[144,128]{1,0:T(1,128)}', space=vmem, size = 0x12000, scoped, tag = 'internal scratch']
  %s0 = inlined_call_operand.hbm [shape: bf16[8,200], index: 0, kind: input, shape index: {}]
  %s1 = inlined_call_operand.hbm [shape: bf16[200,128], index: 1, kind: input, shape index: {}]
  %s2 = inlined_call_operand.vmem [shape: f32[1,128], index: 2, kind: input, shape index: {}]
  %s3 = inlined_call_operand.hbm [shape: bf16[128,128], index: 3, kind: input, shape index: {}]
  %s4 = inlined_call_operand.vmem [shape: f32[1,128], index: 4, kind: input, shape index: {}]
  %s5 = inlined_call_operand.hbm [shape: bf16[128,128], index: 5, kind: input, shape index: {}]
  %s6 = inlined_call_operand.vmem [shape: f32[1,128], index: 6, kind: input, shape index: {}]
  %s7 = inlined_call_operand.hbm [shape: f32[8,128], index: 7, kind: output, shape index: {}]
  %s8 = sld [smem:[#allocation0]]
  $region54: #{tpu_custom_call.1} parent=0
    _
  %s10 = ssub.s32 1, %s8
  %s11 = scalar_select 0, %s10, %s8
  $region1: #{tpu_custom_call.1} parent=0
    #allocation2 [shape = 'u8[4096]{0}', space=vmem, size = 0x1000, scoped, tag = 'input window, operand 0, single buffered']
    #allocation3 [shape = 's32[1]{0}', space=sflag, size = 0x4, scoped, tag = 'scoped memory for tpu_custom_call.1']
    #allocation4 [shape = 's32[1]{0}', space=sflag, size = 0x4, scoped, tag = 'scoped memory for tpu_custom_call.1']
    #allocation5 [shape = 'u8[51200]{0}', space=vmem, size = 0xc800, scoped, tag = 'input window, operand 1, single buffered']
    #allocation6 [shape = 's32[1]{0}', space=sflag, size = 0x4, scoped, tag = 'scoped memory for tpu_custom_call.1']
    #allocation7 [shape = 'u8[32768]{0}', space=vmem, size = 0x8000, scoped, tag = 'input window, operand 3, single buffered']
    #allocation8 [shape = 'u8[32768]{0}', space=vmem, size = 0x8000, scoped, tag = 'input window, operand 5, single buffered']
    #allocation9 [shape = 's32[1]{0}', space=sflag, size = 0x4, scoped, tag = 'scoped memory for tpu_custom_call.1']
    #allocation10 [shape = 'u8[4096]{0}', space=vmem, size = 0x1000, scoped, tag = 'output window, operand 0, single buffered']
    %12 = vsyncpa [#allocation3], 0
    %13 = vsyncpa [#allocation6], 0
    %14 = vsyncpa [#allocation9], 0
    %15 = vsyncpa [#allocation4], 0
    // Predicated region
    $region2: #{tpu_custom_call.1} parent=1 // pred_check
      _
    $region3: #{tpu_custom_call.1} parent=1 // pred_check_branch
      %17 = sbr.rel (0) target = $region5
    $region4: #{tpu_custom_call.1} parent=1 // pred_region
      %s19 = ssub.s32 128, 128
      %20 = vsyncadd [#allocation3], %s19
      %s22 = sshll.u32 [#allocation2], 4
      %s23 = int_to_ptr.vmem [resolvable:$true] %s22
      %25 = dma.hbm_to_vmem [thread:$0]  %s0, 128, %s23, [#allocation3]
    $region5: #{tpu_custom_call.1} parent=1 // pred_fallthru
      _
    // Predicated region
    $region6: #{tpu_custom_call.1} parent=1 // pred_check
      _
    $region7: #{tpu_custom_call.1} parent=1 // pred_check_branch
      %27 = sbr.rel (0) target = $region9
    $region8: #{tpu_custom_call.1} parent=1 // pred_region
      %s29 = ssub.s32 1600, 1600
      %30 = vsyncadd [#allocation6], %s29
      %s31 = sshll.u32 [#allocation5], 4
      %s32 = int_to_ptr.vmem [resolvable:$true] %s31
      %37 = dma.hbm_to_vmem [thread:$0]  %s1, 1600, %s32, [#allocation6], 64, 64, 4
    $region9: #{tpu_custom_call.1} parent=1 // pred_fallthru
      _
    // Predicated region
    $region10: #{tpu_custom_call.1} parent=1 // pred_check
      _
    $region11: #{tpu_custom_call.1} parent=1 // pred_check_branch
      %39 = sbr.rel (0) target = $region13
    $region12: #{tpu_custom_call.1} parent=1 // pred_region
      _
    $region13: #{tpu_custom_call.1} parent=1 // pred_fallthru
      _
    // Predicated region
    $region14: #{tpu_custom_call.1} parent=1 // pred_check
      _
    $region15: #{tpu_custom_call.1} parent=1 // pred_check_branch
      %41 = sbr.rel (0) target = $region17
    $region16: #{tpu_custom_call.1} parent=1 // pred_region
      %s43 = ssub.s32 1024, 1024
      %44 = vsyncadd [#allocation6], %s43
      %s45 = sshll.u32 [#allocation7], 4
      %s46 = int_to_ptr.vmem [resolvable:$true] %s45
      %51 = dma.hbm_to_vmem [thread:$0]  %s3, 1024, %s46, [#allocation6], 64, 64, 4
    $region17: #{tpu_custom_call.1} parent=1 // pred_fallthru
      _
    // Predicated region
    $region18: #{tpu_custom_call.1} parent=1 // pred_check
      _
    $region19: #{tpu_custom_call.1} parent=1 // pred_check_branch
      %53 = sbr.rel (0) target = $region21
    $region20: #{tpu_custom_call.1} parent=1 // pred_region
      _
    $region21: #{tpu_custom_call.1} parent=1 // pred_fallthru
      _
    // Predicated region
    $region22: #{tpu_custom_call.1} parent=1 // pred_check
      _
    $region23: #{tpu_custom_call.1} parent=1 // pred_check_branch
      %55 = sbr.rel (0) target = $region25
    $region24: #{tpu_custom_call.1} parent=1 // pred_region
      %s57 = ssub.s32 1024, 1024
      %58 = vsyncadd [#allocation9], %s57
      %s59 = sshll.u32 [#allocation8], 4
      %s60 = int_to_ptr.vmem [resolvable:$true] %s59
      %65 = dma.hbm_to_vmem [thread:$0]  %s5, 1024, %s60, [#allocation9], 64, 64, 4
    $region25: #{tpu_custom_call.1} parent=1 // pred_fallthru
      _
    // Predicated region
    $region26: #{tpu_custom_call.1} parent=1 // pred_check
      _
    $region27: #{tpu_custom_call.1} parent=1 // pred_check_branch
      %67 = sbr.rel (0) target = $region29
    $region28: #{tpu_custom_call.1} parent=1 // pred_region
      _
    $region29: #{tpu_custom_call.1} parent=1 // pred_fallthru
      _
    // Predicated region
    $region30: #{tpu_custom_call.1} parent=1 // pred_check
      _
    $region31: #{tpu_custom_call.1} parent=1 // pred_check_branch
      %69 = sbr.rel (0) target = $region33
    $region32: #{tpu_custom_call.1} parent=1 // pred_region
      %70 = dma.done [#allocation3], 128
    $region33: #{tpu_custom_call.1} parent=1 // pred_fallthru
      _
    // Predicated region
    $region34: #{tpu_custom_call.1} parent=1 // pred_check
      _
    $region35: #{tpu_custom_call.1} parent=1 // pred_check_branch
      %72 = sbr.rel (0) target = $region37
    $region36: #{tpu_custom_call.1} parent=1 // pred_region
      %73 = dma.done [#allocation6], 1600
    $region37: #{tpu_custom_call.1} parent=1 // pred_fallthru
      _
    // Predicated region
    $region38: #{tpu_custom_call.1} parent=1 // pred_check
      _
    $region39: #{tpu_custom_call.1} parent=1 // pred_check_branch
      %75 = sbr.rel (0) target = $region41
    $region40: #{tpu_custom_call.1} parent=1 // pred_region
      %76 = dma.done [#allocation6], 1024
    $region41: #{tpu_custom_call.1} parent=1 // pred_fallthru
      _
    // Predicated region
    $region42: #{tpu_custom_call.1} parent=1 // pred_check
      _
    $region43: #{tpu_custom_call.1} parent=1 // pred_check_branch
      %78 = sbr.rel (0) target = $region45
    $region44: #{tpu_custom_call.1} parent=1 // pred_region
      %79 = dma.done [#allocation9], 1024
    $region45: #{tpu_custom_call.1} parent=1 // pred_fallthru
      _
    %v81 = vld [vmem:[#allocation2] sm:$0xff]
    %v82 = vld [vmem:[#allocation5] sm:$0xf]
    %v83 = vld [vmem:[#allocation5 + $0x4] sm:$0xf]
    %v84 = vld [vmem:[#allocation5 + $0x8] sm:$0xf]
    %v85 = vld [vmem:[#allocation5 + $0xc] sm:$0xf]
    %v86 = vld [vmem:[#allocation5 + $0x10] sm:$0xf]
    %v87 = vld [vmem:[#allocation5 + $0x14] sm:$0xf]
    %v88 = vld [vmem:[#allocation5 + $0x18] sm:$0xf]
    %v89 = vld [vmem:[#allocation5 + $0x1c] sm:$0xf]
    %v90 = vld [vmem:[#allocation5 + $0x20] sm:$0xf]
    %v91 = vld [vmem:[#allocation5 + $0x24] sm:$0xf]
    %v92 = vld [vmem:[#allocation5 + $0x28] sm:$0xf]
    %v93 = vld [vmem:[#allocation5 + $0x2c] sm:$0xf]
    %v94 = vld [vmem:[#allocation5 + $0x30] sm:$0xf]
    %v95 = vld [vmem:[#allocation5 + $0x34] sm:$0xf]
    %v96 = vld [vmem:[#allocation5 + $0x38] sm:$0xf]
    %v97 = vld [vmem:[#allocation5 + $0x3c] sm:$0xf]
    %v98 = vld [vmem:[#allocation5 + $0x40] sm:$0xf]
    %v99 = vld [vmem:[#allocation5 + $0x44] sm:$0xf]
    %v100 = vld [vmem:[#allocation5 + $0x48] sm:$0xf]
    %v101 = vld [vmem:[#allocation5 + $0x4c] sm:$0xf]
    %v102 = vld [vmem:[#allocation5 + $0x50] sm:$0xf]
    %v103 = vld [vmem:[#allocation5 + $0x54] sm:$0xf]
    %v104 = vld [vmem:[#allocation5 + $0x58] sm:$0xf]
    %v105 = vld [vmem:[#allocation5 + $0x5c] sm:$0xf]
    %v106 = vld [vmem:[#allocation5 + $0x60] sm:$0xf]
    %v107 = vld [vmem:[%s2] sm:$0x1]
    %v109 = vlaneseq
    %v110 = vshrl.u32 %v109, 7
    %v111 = vsub.s32 0, %v110
    %v112 = vrot.slane %v107, %v111
    %v115 = vunpack.c.l.b16 %v81
    %v116 = vunpack.c.h.b16 %v81
    %v117 = vpack.c.b16 %v115, %v115
    %v118 = vpack.c.b16 %v116, %v116
    %v145 = vunpack.c.l.b16 %v82
    %v146 = vunpack.c.l.b16 %v83
    %v147 = vunpack.c.l.b16 %v84
    %v148 = vunpack.c.l.b16 %v85
    %v149 = vunpack.c.l.b16 %v86
    %v150 = vunpack.c.l.b16 %v87
    %v151 = vunpack.c.l.b16 %v88
    %v152 = vunpack.c.l.b16 %v89
    %v153 = vunpack.c.l.b16 %v90
    %v154 = vunpack.c.l.b16 %v91
    %v155 = vunpack.c.l.b16 %v92
    %v156 = vunpack.c.l.b16 %v93
    %v157 = vunpack.c.l.b16 %v94
    %v158 = vunpack.c.l.b16 %v95
    %v159 = vunpack.c.l.b16 %v96
    %v160 = vunpack.c.l.b16 %v97
    %v161 = vunpack.c.l.b16 %v98
    %v162 = vunpack.c.l.b16 %v99
    %v163 = vunpack.c.l.b16 %v100
    %v164 = vunpack.c.l.b16 %v101
    %v165 = vunpack.c.l.b16 %v102
    %v166 = vunpack.c.l.b16 %v103
    %v167 = vunpack.c.l.b16 %v104
    %v168 = vunpack.c.l.b16 %v105
    %v169 = vunpack.c.l.b16 %v106
    %v170 = vpack.c.b16 %v146, %v145
    %v171 = vpack.c.b16 %v148, %v147
    %v172 = vpack.c.b16 %v150, %v149
    %v173 = vpack.c.b16 %v152, %v151
    %v174 = vpack.c.b16 %v154, %v153
    %v175 = vpack.c.b16 %v156, %v155
    %v176 = vpack.c.b16 %v158, %v157
    %v177 = vpack.c.b16 %v160, %v159
    %v178 = vpack.c.b16 %v162, %v161
    %v179 = vpack.c.b16 %v164, %v163
    %v180 = vpack.c.b16 %v166, %v165
    %v181 = vpack.c.b16 %v168, %v167
    %v182 = vpack.c.b16 %v169, %v169
    %vm195 = vcmask 588800
    %v197 = vsel %vm195, %v118, 0
    %vm199 = vcmask 1043456
    %v201 = vsel %vm199, %v182, 0
    %203 = vmatprep.subr.bf16.mxu0 0
    %204 = vmatpush1.bf16.msra.mxu0 %v170
    %205 = vmatprep.subr.bf16.mxu0 0
    %206 = vmatpush1.bf16.msra.mxu0 %v171
    %207 = vmatprep.subr.bf16.mxu0 0
    %208 = vmatpush1.bf16.msra.mxu0 %v172
    %209 = vmatprep.subr.bf16.mxu0 0
    %210 = vmatpush1.bf16.msra.mxu0 %v173
    %211 = vmatprep.subr.bf16.mxu0 0
    %212 = vmatpush1.bf16.msra.mxu0 %v174
    %213 = vmatprep.subr.bf16.mxu0 0
    %214 = vmatpush1.bf16.msra.mxu0 %v175
    %215 = vmatprep.subr.bf16.mxu0 0
    %216 = vmatpush1.bf16.msra.mxu0 %v176
    %217 = vmatprep.subr.bf16.mxu0 0
    %218 = vmatpush1.bf16.msra.mxu0 %v177
    %219 = vmatprep.subr.bf16.mxu0 0
    %220 = vmatpush1.bf16.msra.mxu0 %v178
    %221 = vmatprep.subr.bf16.mxu0 0
    %222 = vmatpush1.bf16.msra.mxu0 %v179
    %223 = vmatprep.subr.bf16.mxu0 0
    %224 = vmatpush1.bf16.msra.mxu0 %v180
    %225 = vmatprep.subr.bf16.mxu0 0
    %226 = vmatpush1.bf16.msra.mxu0 %v181
    %227 = vmatprep.subr.bf16.mxu0 0
    %228 = vmatpush1.bf16.msra.mxu0 %v201
    %229 = vmatprep.subr.bf16.mxu0 0
    %230 = vmatpush1.bf16.msra.mxu0 0
    %231 = vmatprep.subr.bf16.mxu0 0
    %232 = vmatpush1.bf16.msra.mxu0 0
    %233 = vmatprep.subr.bf16.mxu0 0
    %234 = vmatpush1.bf16.msra.mxu0 0
    %235 = vmatprep.mubr.bf16.mxu0 %v197
    %236 = vmatmul.mubr.bf16.gmra.mrb[0].mxu0 %v117
    %v237 = vpop.f32.mrb[0].mxu0
    %v238 = vadd.f32 %v112, %v237
    %v239 = vpop.f32.mrb[0].mxu0
    %v240 = vpop.f32.mrb[0].mxu0
    %v241 = vpop.f32.mrb[0].mxu0
    %242 = vdwg.mxu0
    %v243 = vxor.u32 %v238, 2147483648
    %v244 = vmul.f32 %v243, 1.442695
    %v245 = vpow.pop %v244
    %v246 = vadd.f32 %v245, 1.0
    %v247 = vrcp.pop %v246
    %v248 = vmul.f32 1.0, %v247
    %v249 = vpack.c.bf16 %v248, %v248
    %v250 = vld [vmem:[#allocation7] sm:$0xf]
    %v251 = vld [vmem:[#allocation7 + $0x4] sm:$0xf]
    %v252 = vld [vmem:[#allocation7 + $0x8] sm:$0xf]
    %v253 = vld [vmem:[#allocation7 + $0xc] sm:$0xf]
    %v254 = vld [vmem:[#allocation7 + $0x10] sm:$0xf]
    %v255 = vld [vmem:[#allocation7 + $0x14] sm:$0xf]
    %v256 = vld [vmem:[#allocation7 + $0x18] sm:$0xf]
    %v257 = vld [vmem:[#allocation7 + $0x1c] sm:$0xf]
    %v258 = vld [vmem:[#allocation7 + $0x20] sm:$0xf]
    %v259 = vld [vmem:[#allocation7 + $0x24] sm:$0xf]
    %v260 = vld [vmem:[#allocation7 + $0x28] sm:$0xf]
    %v261 = vld [vmem:[#allocation7 + $0x2c] sm:$0xf]
    %v262 = vld [vmem:[#allocation7 + $0x30] sm:$0xf]
    %v263 = vld [vmem:[#allocation7 + $0x34] sm:$0xf]
    %v264 = vld [vmem:[#allocation7 + $0x38] sm:$0xf]
    %v265 = vld [vmem:[#allocation7 + $0x3c] sm:$0xf]
    %v266 = vld [vmem:[%s4] sm:$0x1]
    %v268 = vlaneseq
    %v269 = vshrl.u32 %v268, 7
    %v270 = vsub.s32 0, %v269
    %v271 = vrot.slane %v266, %v270
    %v289 = vunpack.c.l.b16 %v250
    %v290 = vunpack.c.l.b16 %v251
    %v291 = vunpack.c.l.b16 %v252
    %v292 = vunpack.c.l.b16 %v253
    %v293 = vunpack.c.l.b16 %v254
    %v294 = vunpack.c.l.b16 %v255
    %v295 = vunpack.c.l.b16 %v256
    %v296 = vunpack.c.l.b16 %v257
    %v297 = vunpack.c.l.b16 %v258
    %v298 = vunpack.c.l.b16 %v259
    %v299 = vunpack.c.l.b16 %v260
    %v300 = vunpack.c.l.b16 %v261
    %v301 = vunpack.c.l.b16 %v262
    %v302 = vunpack.c.l.b16 %v263
    %v303 = vunpack.c.l.b16 %v264
    %v304 = vunpack.c.l.b16 %v265
    %v305 = vpack.c.b16 %v290, %v289
    %v306 = vpack.c.b16 %v292, %v291
    %v307 = vpack.c.b16 %v294, %v293
    %v308 = vpack.c.b16 %v296, %v295
    %v309 = vpack.c.b16 %v298, %v297
    %v310 = vpack.c.b16 %v300, %v299
    %v311 = vpack.c.b16 %v302, %v301
    %v312 = vpack.c.b16 %v304, %v303
    %321 = vmatprep.subr.bf16.mxu0 0
    %322 = vmatpush1.bf16.msra.mxu0 %v305
    %323 = vmatprep.subr.bf16.mxu0 0
    %324 = vmatpush1.bf16.msra.mxu0 %v306
    %325 = vmatprep.subr.bf16.mxu0 0
    %326 = vmatpush1.bf16.msra.mxu0 %v307
    %327 = vmatprep.subr.bf16.mxu0 0
    %328 = vmatpush1.bf16.msra.mxu0 %v308
    %329 = vmatprep.subr.bf16.mxu0 0
    %330 = vmatpush1.bf16.msra.mxu0 %v309
    %331 = vmatprep.subr.bf16.mxu0 0
    %332 = vmatpush1.bf16.msra.mxu0 %v310
    %333 = vmatprep.subr.bf16.mxu0 0
    %334 = vmatpush1.bf16.msra.mxu0 %v311
    %335 = vmatprep.subr.bf16.mxu0 0
    %336 = vmatpush1.bf16.msra.mxu0 %v312
    %337 = vmatprep.subr.bf16.mxu0 0
    %338 = vmatpush1.bf16.msra.mxu0 0
    %339 = vmatprep.subr.bf16.mxu0 0
    %340 = vmatpush1.bf16.msra.mxu0 0
    %341 = vmatprep.subr.bf16.mxu0 0
    %342 = vmatpush1.bf16.msra.mxu0 0
    %343 = vmatprep.subr.bf16.mxu0 0
    %344 = vmatpush1.bf16.msra.mxu0 0
    %345 = vmatprep.subr.bf16.mxu0 0
    %346 = vmatpush1.bf16.msra.mxu0 0
    %347 = vmatprep.subr.bf16.mxu0 0
    %348 = vmatpush1.bf16.msra.mxu0 0
    %349 = vmatprep.subr.bf16.mxu0 0
    %350 = vmatpush1.bf16.msra.mxu0 0
    %351 = vmatprep.subr.bf16.mxu0 0
    %352 = vmatpush1.bf16.msra.mxu0 0
    %353 = vmatprep.mubr.bf16.mxu0 0
    %354 = vmatmul.mubr.bf16.gmra.mrb[0].mxu0 %v249
    %v355 = vpop.f32.mrb[0].mxu0
    %v356 = vadd.f32 %v271, %v355
    %v357 = vpop.f32.mrb[0].mxu0
    %v358 = vpop.f32.mrb[0].mxu0
    %v359 = vpop.f32.mrb[0].mxu0
    %360 = vdwg.mxu0
    %v361 = vxor.u32 %v356, 2147483648
    %v362 = vmul.f32 %v361, 1.442695
    %v363 = vpow.pop %v362
    %v364 = vadd.f32 %v363, 1.0
    %v365 = vrcp.pop %v364
    %v366 = vmul.f32 1.0, %v365
    %v367 = vpack.c.bf16 %v366, %v366
    %v368 = vld [vmem:[#allocation8] sm:$0xf]
    %v369 = vld [vmem:[#allocation8 + $0x4] sm:$0xf]
    %v370 = vld [vmem:[#allocation8 + $0x8] sm:$0xf]
    %v371 = vld [vmem:[#allocation8 + $0xc] sm:$0xf]
    %v372 = vld [vmem:[#allocation8 + $0x10] sm:$0xf]
    %v373 = vld [vmem:[#allocation8 + $0x14] sm:$0xf]
    %v374 = vld [vmem:[#allocation8 + $0x18] sm:$0xf]
    %v375 = vld [vmem:[#allocation8 + $0x1c] sm:$0xf]
    %v376 = vld [vmem:[#allocation8 + $0x20] sm:$0xf]
    %v377 = vld [vmem:[#allocation8 + $0x24] sm:$0xf]
    %v378 = vld [vmem:[#allocation8 + $0x28] sm:$0xf]
    %v379 = vld [vmem:[#allocation8 + $0x2c] sm:$0xf]
    %v380 = vld [vmem:[#allocation8 + $0x30] sm:$0xf]
    %v381 = vld [vmem:[#allocation8 + $0x34] sm:$0xf]
    %v382 = vld [vmem:[#allocation8 + $0x38] sm:$0xf]
    %v383 = vld [vmem:[#allocation8 + $0x3c] sm:$0xf]
    %v384 = vld [vmem:[%s6] sm:$0x1]
    %v386 = vlaneseq
    %v387 = vshrl.u32 %v386, 7
    %v388 = vsub.s32 0, %v387
    %v389 = vrot.slane %v384, %v388
    %v407 = vunpack.c.l.b16 %v368
    %v408 = vunpack.c.l.b16 %v369
    %v409 = vunpack.c.l.b16 %v370
    %v410 = vunpack.c.l.b16 %v371
    %v411 = vunpack.c.l.b16 %v372
    %v412 = vunpack.c.l.b16 %v373
    %v413 = vunpack.c.l.b16 %v374
    %v414 = vunpack.c.l.b16 %v375
    %v415 = vunpack.c.l.b16 %v376
    %v416 = vunpack.c.l.b16 %v377
    %v417 = vunpack.c.l.b16 %v378
    %v418 = vunpack.c.l.b16 %v379
    %v419 = vunpack.c.l.b16 %v380
    %v420 = vunpack.c.l.b16 %v381
    %v421 = vunpack.c.l.b16 %v382
    %v422 = vunpack.c.l.b16 %v383
    %v423 = vpack.c.b16 %v408, %v407
    %v424 = vpack.c.b16 %v410, %v409
    %v425 = vpack.c.b16 %v412, %v411
    %v426 = vpack.c.b16 %v414, %v413
    %v427 = vpack.c.b16 %v416, %v415
    %v428 = vpack.c.b16 %v418, %v417
    %v429 = vpack.c.b16 %v420, %v419
    %v430 = vpack.c.b16 %v422, %v421
    %439 = vmatprep.subr.bf16.mxu0 0
    %440 = vmatpush1.bf16.msra.mxu0 %v423
    %441 = vmatprep.subr.bf16.mxu0 0
    %442 = vmatpush1.bf16.msra.mxu0 %v424
    %443 = vmatprep.subr.bf16.mxu0 0
    %444 = vmatpush1.bf16.msra.mxu0 %v425
    %445 = vmatprep.subr.bf16.mxu0 0
    %446 = vmatpush1.bf16.msra.mxu0 %v426
    %447 = vmatprep.subr.bf16.mxu0 0
    %448 = vmatpush1.bf16.msra.mxu0 %v427
    %449 = vmatprep.subr.bf16.mxu0 0
    %450 = vmatpush1.bf16.msra.mxu0 %v428
    %451 = vmatprep.subr.bf16.mxu0 0
    %452 = vmatpush1.bf16.msra.mxu0 %v429
    %453 = vmatprep.subr.bf16.mxu0 0
    %454 = vmatpush1.bf16.msra.mxu0 %v430
    %455 = vmatprep.subr.bf16.mxu0 0
    %456 = vmatpush1.bf16.msra.mxu0 0
    %457 = vmatprep.subr.bf16.mxu0 0
    %458 = vmatpush1.bf16.msra.mxu0 0
    %459 = vmatprep.subr.bf16.mxu0 0
    %460 = vmatpush1.bf16.msra.mxu0 0
    %461 = vmatprep.subr.bf16.mxu0 0
    %462 = vmatpush1.bf16.msra.mxu0 0
    %463 = vmatprep.subr.bf16.mxu0 0
    %464 = vmatpush1.bf16.msra.mxu0 0
    %465 = vmatprep.subr.bf16.mxu0 0
    %466 = vmatpush1.bf16.msra.mxu0 0
    %467 = vmatprep.subr.bf16.mxu0 0
    %468 = vmatpush1.bf16.msra.mxu0 0
    %469 = vmatprep.subr.bf16.mxu0 0
    %470 = vmatpush1.bf16.msra.mxu0 0
    %471 = vmatprep.mubr.bf16.mxu0 0
    %472 = vmatmul.mubr.bf16.gmra.mrb[0].mxu0 %v367
    %v473 = vpop.f32.mrb[0].mxu0
    %v474 = vadd.f32 %v389, %v473
    %v475 = vpop.f32.mrb[0].mxu0
    %v476 = vpop.f32.mrb[0].mxu0
    %v477 = vpop.f32.mrb[0].mxu0
    %478 = vdwg.mxu0
    %479 = vmax.xlane.f32.xlu0 %v474
    %v480 = vpop.xlane.xlu0 %479
    %v481 = vsub.f32 %v474, %v480
    %v482 = vmul.f32 %v481, 1.442695
    %v483 = vpow.pop %v482
    %484 = vadd.xlane.f32.xlu0 %v483
    %v485 = vpop.xlane.xlu0 %484
    %v486 = vrcp.pop %v485
    %v487 = vmul.f32 %v483, %v486
    %488 = vst [vmem:[#allocation10] sm:$0xff] %v487
    // Predicated region
    $region46: #{tpu_custom_call.1} parent=1 // pred_check
      _
    $region47: #{tpu_custom_call.1} parent=1 // pred_check_branch
      %490 = sbr.rel (0) target = $region49
    $region48: #{tpu_custom_call.1} parent=1 // pred_region
      %s492 = ssub.s32 128, 128
      %493 = vsyncadd [#allocation4], %s492
      %s495 = sshll.u32 [#allocation10], 4
      %s496 = int_to_ptr.vmem [resolvable:$true] %s495
      %498 = dma.vmem_to_hbm [thread:$0]  %s496, 128, %s7, [#allocation4]
    $region49: #{tpu_custom_call.1} parent=1 // pred_fallthru
      _
    // Predicated region
    $region50: #{tpu_custom_call.1} parent=1 // pred_check
      _
    $region51: #{tpu_custom_call.1} parent=1 // pred_check_branch
      %500 = sbr.rel (0) target = $region53
    $region52: #{tpu_custom_call.1} parent=1 // pred_region
      %501 = dma.done [#allocation4], 128
    $region53: #{tpu_custom_call.1} parent=1 // pred_fallthru
      _
    %502 = vsyncpa [#allocation3], 1
    %503 = vsyncpa [#allocation6], 1
    %504 = vsyncpa [#allocation9], 1
    %505 = vsyncpa [#allocation4], 1

</llo_original>
